<compile_context>
chip_gen: v7x
topology: tpu7x:2x2x1
jax: 0.10.0
libtpu: 0.0.40
codegen_flags: <defaults>
</compile_context>

<pallas_src>
import functools

import numpy as np
import jax
import jax.numpy as jnp
from jax.experimental import pallas as pl
from jax.experimental.pallas import tpu as pltpu

BN_EPS = 1e-5
LANE = 128
SUBLANE = 8


def _round_up(n, m):
    return ((n + m - 1) // m) * m


def _generator_kernel(n_res, b_real, e_pad, o_pads, x_ref, gb_ref, *refs):
    """refs = (W_0, ..., W_{n-1}, W_final, b_final, out_ref, slab_scratch)."""
    w_refs = refs[:n_res]
    wf_ref = refs[n_res]
    bf_ref = refs[n_res + 1]
    out_ref = refs[n_res + 2]
    slab = refs[n_res + 3]

    b_pad = x_ref.shape[0]

    # Stage the (already lane/sublane padded) input into the activation slab.
    slab[:, 0:e_pad] = x_ref[...]

    # Row mask so padded batch rows never contaminate the BN statistics.
    # Hoisted out of the block loop (broadcasts are not CSE'd by JAX).
    if b_real != b_pad:
        rows = jax.lax.broadcasted_iota(jnp.int32, (b_pad, 1), 0)
        row_mask = (rows < b_real).astype(jnp.float32)
    else:
        row_mask = None
    inv_b = jnp.float32(1.0 / b_real)

    off = e_pad
    for k in range(n_res):
        o_pad = o_pads[k]
        x_in = slab[:, 0:off]                       # static, lane-aligned slice
        # Linear (per-block bias folded away: training-mode BN cancels it).
        # NOTE: at realistic CTGAN sizes on v6e/v7x, cast x_in / weights to
        # bf16 here (keep preferred_element_type=f32); at these toy shapes and
        # on v5e elementwise, f32 is the right choice.
        h = jnp.dot(x_in, w_refs[k][...], preferred_element_type=jnp.float32)

        # Masked batch statistics (biased variance, PyTorch training-mode BN).
        hm = h if row_mask is None else h * row_mask
        mu = jnp.sum(hm, axis=0, keepdims=True) * inv_b
        ex2 = jnp.sum(hm * hm, axis=0, keepdims=True) * inv_b
        var = jnp.maximum(ex2 - mu * mu, 0.0)

        gamma = gb_ref[2 * k:2 * k + 1, 0:o_pad]    # [1, o_pad], static slice
        beta = gb_ref[2 * k + 1:2 * k + 2, 0:o_pad]
        s = gamma * jax.lax.rsqrt(var + BN_EPS)     # fused BN scale (EUP rsqrt)
        t = beta - mu * s                           # fused BN shift

        # ReLU(BN(h)) written into its static slab slice (no concat copies).
        slab[:, off:off + o_pad] = jnp.maximum(h * s + t, 0.0)
        off += o_pad

    # Final Linear over the whole slab; output store is lane-dense.
    out_ref[...] = (
        jnp.dot(slab[...], wf_ref[...], preferred_element_type=jnp.float32)
        + bf_ref[...]
    ).astype(out_ref.dtype)


def pack_generator_params(res_params, final_w, final_b,
                          embedding_dim, generator_dim, data_dim):
    """Remap PyTorch-layout params into the kernel's padded slab layout.

    res_params: list of (W [o, d_in], b [o], gamma [o], beta [o]) where d_in
                follows PyTorch's concat order [out_{k-1}, ..., out_0, x].
    """
    n_res = len(generator_dim)
    e = embedding_dim
    e_pad = _round_up(e, LANE)
    o_pads = [_round_up(o, LANE) for o in generator_dim]
    max_opad = max(o_pads)

    # Slab column offsets: [x | out_0 | out_1 | ...], each segment lane-padded.
    slab_off = []
    cur = e_pad
    for o_pad in o_pads:
        slab_off.append(cur)
        cur += o_pad
    d_total_pad = cur

    def remap(w, out_cols, out_cols_pad, n_prev):
        """PyTorch weight [out_cols, d_in] -> padded slab-ordered [d_in_pad, out_cols_pad]."""
        wt = np.asarray(w, np.float32).T            # [d_in, out_cols]
        d_in_pad = e_pad + sum(o_pads[:n_prev])
        wt_pad = np.zeros((d_in_pad, out_cols_pad), np.float32)
        pos = 0
        for m in range(n_prev - 1, -1, -1):         # torch order: out_{k-1},...,out_0,x
            om = generator_dim[m]
            wt_pad[slab_off[m]:slab_off[m] + om, :out_cols] = wt[pos:pos + om, :]
            pos += om
        wt_pad[0:e, :out_cols] = wt[pos:pos + e, :]
        return jnp.asarray(wt_pad)

    w_list = []
    gb = np.zeros((2 * n_res, max_opad), np.float32)
    for k, (w, _b, gamma, beta) in enumerate(res_params):
        o = generator_dim[k]
        w_list.append(remap(w, o, o_pads[k], k))
        gb[2 * k, :o] = np.asarray(gamma, np.float32)
        gb[2 * k + 1, :o] = np.asarray(beta, np.float32)
        # Per-block Linear bias intentionally dropped: training-mode BN
        # subtracts the batch mean, which cancels a per-feature constant.

    data_pad = _round_up(data_dim, LANE)
    wf = remap(final_w, data_dim, data_pad, n_res)
    bf = np.zeros((1, data_pad), np.float32)
    bf[0, :data_dim] = np.asarray(final_b, np.float32)

    return dict(
        w_list=w_list, gb=jnp.asarray(gb), wf=wf, bf=jnp.asarray(bf),
        e=e, e_pad=e_pad, o_pads=tuple(o_pads),
        d_total_pad=d_total_pad, data_dim=data_dim, data_pad=data_pad,
    )


def generator_forward(x, packed):
    """Run the full Generator forward in one pallas_call."""
    n_res = len(packed["w_list"])
    b_real = x.shape[0]
    b_pad = _round_up(max(b_real, SUBLANE), SUBLANE)
    e, e_pad = packed["e"], packed["e_pad"]

    x_pad = jnp.zeros((b_pad, e_pad), jnp.float32)
    x_pad = x_pad.at[:b_real, :e].set(x.astype(jnp.float32))

    kernel = functools.partial(
        _generator_kernel, n_res, b_real, e_pad, packed["o_pads"])

    vmem = pl.BlockSpec(memory_space=pltpu.MemorySpace.VMEM)
    inputs = ([x_pad, packed["gb"]] + list(packed["w_list"])
              + [packed["wf"], packed["bf"]])

    out = pl.pallas_call(
        kernel,
        out_shape=jax.ShapeDtypeStruct((b_pad, packed["data_pad"]), jnp.float32),
        in_specs=[vmem] * len(inputs),
        out_specs=vmem,
        scratch_shapes=[pltpu.VMEM((b_pad, packed["d_total_pad"]), jnp.float32)],
    )(*inputs)

    return out[:b_real, :packed["data_dim"]]


def init_generator_params(key, embedding_dim, generator_dim, data_dim):
    """Deterministic init, PyTorch layout: W [o, d_in], b/gamma/beta [o]."""
    res_params = []
    dim = embedding_dim
    for o in generator_dim:
        key, k_w, k_b, k_g, k_bt = jax.random.split(key, 5)
        bound = 1.0 / float(np.sqrt(dim))
        w = jax.random.uniform(k_w, (o, dim), jnp.float32, -bound, bound)
        b = jax.random.uniform(k_b, (o,), jnp.float32, -bound, bound)
        gamma = 1.0 + 0.1 * jax.random.normal(k_g, (o,), jnp.float32)
        beta = 0.1 * jax.random.normal(k_bt, (o,), jnp.float32)
        res_params.append((w, b, gamma, beta))
        dim += o
    key, k_w, k_b = jax.random.split(key, 3)
    bound = 1.0 / float(np.sqrt(dim))
    w_f = jax.random.uniform(k_w, (data_dim, dim), jnp.float32, -bound, bound)
    b_f = jax.random.uniform(k_b, (data_dim,), jnp.float32, -bound, bound)
    return res_params, w_f, b_f


def generator_reference(x, res_params, final_w, final_b):
    """Plain-JAX reference matching the PyTorch module (training mode)."""
    h = x
    for (w, b, g, bt) in res_params:
        z = h @ w.T + b
        mu = jnp.mean(z, axis=0, keepdims=True)
        var = jnp.mean((z - mu) ** 2, axis=0, keepdims=True)
        zn = (z - mu) / jnp.sqrt(var + BN_EPS) * g + bt
        out = jnp.maximum(zn, 0.0)
        h = jnp.concatenate([out, h], axis=1)       # [out, input_] as in CTGAN
    return h @ final_w.T + final_b


if __name__ == "__main__":
    batch = 6                 # real batch (padded to 8 sublanes in the wrapper)
    embedding_dim = 32
    generator_dim = (32, 32)
    data_dim = 16

    key = jax.random.PRNGKey(0)
    key, k_x = jax.random.split(key)
    x = jax.random.normal(k_x, (batch, embedding_dim), jnp.float32)

    res_params, final_w, final_b = init_generator_params(
        key, embedding_dim, generator_dim, data_dim)

    packed = pack_generator_params(res_params, final_w, final_b,
                                   embedding_dim, generator_dim, data_dim)

    out = generator_forward(x, packed)
    out = jax.block_until_ready(out)

    ref = generator_reference(x, res_params, final_w, final_b)
    assert out.shape == (batch, data_dim)
    assert jnp.allclose(out, ref, atol=1e-4, rtol=1e-4), "mismatch vs reference"

    print("KERNEL_OK")
</pallas_src>

<mosaic_0001>
module attributes {stable_mosaic.version = 11 : i64} {
  func.func @_generator_kernel(%arg0: memref<8x128xf32, #tpu.memory_space<vmem>>, %arg1: memref<4x128xf32, #tpu.memory_space<vmem>>, %arg2: memref<128x128xf32, #tpu.memory_space<vmem>>, %arg3: memref<256x128xf32, #tpu.memory_space<vmem>>, %arg4: memref<384x128xf32, #tpu.memory_space<vmem>>, %arg5: memref<1x128xf32, #tpu.memory_space<vmem>>, %arg6: memref<8x128xf32, #tpu.memory_space<vmem>>, %arg7: memref<8x384xf32, #tpu.memory_space<vmem>>) attributes {dimension_semantics = [], scalar_prefetch = 0 : i64, scratch_operands = 1 : i64, tpu.core_type = #tpu.core_type<tc>} {
    %c0 = arith.constant 0 : index
    %c0_0 = arith.constant 0 : index
    %0 = vector.load %arg0[%c0, %c0_0] : memref<8x128xf32, #tpu.memory_space<vmem>>, vector<8x128xf32>
    %c0_1 = arith.constant 0 : index
    %c0_2 = arith.constant 0 : index
    %1 = vector.load %arg7[%c0_1, %c0_2] : memref<8x384xf32, #tpu.memory_space<vmem>>, vector<8x128xf32>
    tpu.vector_store %arg7[%c0_1, %c0_2], %0 {strides = array<i32>} : memref<8x384xf32, #tpu.memory_space<vmem>>, vector<8x128xf32>,
    %2 = tpu.iota {dimensions = array<i32: 0>} : vector<8x1xi32>
    %c6_i32 = arith.constant 6 : i32
    %3 = vector.broadcast %c6_i32 : i32 to vector<8x1xi32>
    %4 = arith.cmpi slt, %2, %3 : vector<8x1xi32>
    %5 = arith.extui %4 : vector<8x1xi1> to vector<8x1xi32>
    %6 = arith.sitofp %5 : vector<8x1xi32> to vector<8x1xf32>
    %c0_3 = arith.constant 0 : index
    %c0_4 = arith.constant 0 : index
    %7 = vector.load %arg7[%c0_3, %c0_4] : memref<8x384xf32, #tpu.memory_space<vmem>>, vector<8x128xf32>
    %c0_5 = arith.constant 0 : index
    %c0_6 = arith.constant 0 : index
    %8 = vector.load %arg2[%c0_5, %c0_6] : memref<128x128xf32, #tpu.memory_space<vmem>>, vector<128x128xf32>
    %cst = arith.constant dense<0.000000e+00> : vector<8x128xf32>
    %9 = tpu.matmul %7, %8, %cst {dimension_numbers = #tpu.dot_dimension_numbers<[1], [0], [0], [1], [0, 0, 1, 1], [], []>} : vector<8x128xf32>, vector<128x128xf32>, vector<8x128xf32> -> vector<8x128xf32>
    %10 = vector.broadcast %6 : vector<8x1xf32> to vector<8x128xf32>
    %11 = arith.mulf %9, %10 : vector<8x128xf32>
    %cst_7 = arith.constant dense<0.000000e+00> : vector<128xf32>
    %12 = vector.multi_reduction <add>, %11, %cst_7 [0] : vector<8x128xf32> to vector<128xf32>
    %13 = vector.shape_cast %12 : vector<128xf32> to vector<1x128xf32>
    %cst_8 = arith.constant 0.166666672 : f32
    %14 = vector.broadcast %cst_8 : f32 to vector<1x128xf32>
    %15 = arith.mulf %13, %14 : vector<1x128xf32>
    %16 = arith.mulf %11, %11 : vector<8x128xf32>
    %cst_9 = arith.constant dense<0.000000e+00> : vector<128xf32>
    %17 = vector.multi_reduction <add>, %16, %cst_9 [0] : vector<8x128xf32> to vector<128xf32>
    %18 = vector.shape_cast %17 : vector<128xf32> to vector<1x128xf32>
    %cst_10 = arith.constant 0.166666672 : f32
    %19 = vector.broadcast %cst_10 : f32 to vector<1x128xf32>
    %20 = arith.mulf %18, %19 : vector<1x128xf32>
    %21 = arith.mulf %15, %15 : vector<1x128xf32>
    %22 = arith.subf %20, %21 : vector<1x128xf32>
    %cst_11 = arith.constant 0.000000e+00 : f32
    %23 = vector.broadcast %cst_11 : f32 to vector<1x128xf32>
    %24 = arith.maximumf %22, %23 : vector<1x128xf32>
    %c0_12 = arith.constant 0 : index
    %c0_13 = arith.constant 0 : index
    %25 = vector.load %arg1[%c0_12, %c0_13] : memref<4x128xf32, #tpu.memory_space<vmem>>, vector<1x128xf32>
    %c1 = arith.constant 1 : index
    %c0_14 = arith.constant 0 : index
    %26 = vector.load %arg1[%c1, %c0_14] : memref<4x128xf32, #tpu.memory_space<vmem>>, vector<1x128xf32>
    %cst_15 = arith.constant 9.99999974E-6 : f32
    %27 = vector.broadcast %cst_15 : f32 to vector<1x128xf32>
    %28 = arith.addf %24, %27 : vector<1x128xf32>
    %29 = math.rsqrt %28 : vector<1x128xf32>
    %30 = arith.mulf %25, %29 : vector<1x128xf32>
    %31 = arith.mulf %15, %30 : vector<1x128xf32>
    %32 = arith.subf %26, %31 : vector<1x128xf32>
    %33 = vector.broadcast %30 : vector<1x128xf32> to vector<8x128xf32>
    %34 = arith.mulf %9, %33 : vector<8x128xf32>
    %35 = vector.broadcast %32 : vector<1x128xf32> to vector<8x128xf32>
    %36 = arith.addf %34, %35 : vector<8x128xf32>
    %cst_16 = arith.constant 0.000000e+00 : f32
    %37 = vector.broadcast %cst_16 : f32 to vector<8x128xf32>
    %38 = arith.maximumf %36, %37 : vector<8x128xf32>
    %c0_17 = arith.constant 0 : index
    %c128 = arith.constant 128 : index
    %39 = vector.load %arg7[%c0_17, %c128] : memref<8x384xf32, #tpu.memory_space<vmem>>, vector<8x128xf32>
    tpu.vector_store %arg7[%c0_17, %c128], %38 {strides = array<i32>} : memref<8x384xf32, #tpu.memory_space<vmem>>, vector<8x128xf32>,
    %c0_18 = arith.constant 0 : index
    %c0_19 = arith.constant 0 : index
    %40 = vector.load %arg7[%c0_18, %c0_19] : memref<8x384xf32, #tpu.memory_space<vmem>>, vector<8x256xf32>
    %c0_20 = arith.constant 0 : index
    %c0_21 = arith.constant 0 : index
    %41 = vector.load %arg3[%c0_20, %c0_21] : memref<256x128xf32, #tpu.memory_space<vmem>>, vector<256x128xf32>
    %cst_22 = arith.constant dense<0.000000e+00> : vector<8x128xf32>
    %42 = tpu.matmul %40, %41, %cst_22 {dimension_numbers = #tpu.dot_dimension_numbers<[1], [0], [0], [1], [0, 0, 1, 1], [], []>} : vector<8x256xf32>, vector<256x128xf32>, vector<8x128xf32> -> vector<8x128xf32>
    %43 = vector.broadcast %6 : vector<8x1xf32> to vector<8x128xf32>
    %44 = arith.mulf %42, %43 : vector<8x128xf32>
    %cst_23 = arith.constant dense<0.000000e+00> : vector<128xf32>
    %45 = vector.multi_reduction <add>, %44, %cst_23 [0] : vector<8x128xf32> to vector<128xf32>
    %46 = vector.shape_cast %45 : vector<128xf32> to vector<1x128xf32>
    %cst_24 = arith.constant 0.166666672 : f32
    %47 = vector.broadcast %cst_24 : f32 to vector<1x128xf32>
    %48 = arith.mulf %46, %47 : vector<1x128xf32>
    %49 = arith.mulf %44, %44 : vector<8x128xf32>
    %cst_25 = arith.constant dense<0.000000e+00> : vector<128xf32>
    %50 = vector.multi_reduction <add>, %49, %cst_25 [0] : vector<8x128xf32> to vector<128xf32>
    %51 = vector.shape_cast %50 : vector<128xf32> to vector<1x128xf32>
    %cst_26 = arith.constant 0.166666672 : f32
    %52 = vector.broadcast %cst_26 : f32 to vector<1x128xf32>
    %53 = arith.mulf %51, %52 : vector<1x128xf32>
    %54 = arith.mulf %48, %48 : vector<1x128xf32>
    %55 = arith.subf %53, %54 : vector<1x128xf32>
    %cst_27 = arith.constant 0.000000e+00 : f32
    %56 = vector.broadcast %cst_27 : f32 to vector<1x128xf32>
    %57 = arith.maximumf %55, %56 : vector<1x128xf32>
    %c2 = arith.constant 2 : index
    %c0_28 = arith.constant 0 : index
    %58 = vector.load %arg1[%c2, %c0_28] : memref<4x128xf32, #tpu.memory_space<vmem>>, vector<1x128xf32>
    %c3 = arith.constant 3 : index
    %c0_29 = arith.constant 0 : index
    %59 = vector.load %arg1[%c3, %c0_29] : memref<4x128xf32, #tpu.memory_space<vmem>>, vector<1x128xf32>
    %cst_30 = arith.constant 9.99999974E-6 : f32
    %60 = vector.broadcast %cst_30 : f32 to vector<1x128xf32>
    %61 = arith.addf %57, %60 : vector<1x128xf32>
    %62 = math.rsqrt %61 : vector<1x128xf32>
    %63 = arith.mulf %58, %62 : vector<1x128xf32>
    %64 = arith.mulf %48, %63 : vector<1x128xf32>
    %65 = arith.subf %59, %64 : vector<1x128xf32>
    %66 = vector.broadcast %63 : vector<1x128xf32> to vector<8x128xf32>
    %67 = arith.mulf %42, %66 : vector<8x128xf32>
    %68 = vector.broadcast %65 : vector<1x128xf32> to vector<8x128xf32>
    %69 = arith.addf %67, %68 : vector<8x128xf32>
    %cst_31 = arith.constant 0.000000e+00 : f32
    %70 = vector.broadcast %cst_31 : f32 to vector<8x128xf32>
    %71 = arith.maximumf %69, %70 : vector<8x128xf32>
    %c0_32 = arith.constant 0 : index
    %c256 = arith.constant 256 : index
    %72 = vector.load %arg7[%c0_32, %c256] : memref<8x384xf32, #tpu.memory_space<vmem>>, vector<8x128xf32>
    tpu.vector_store %arg7[%c0_32, %c256], %71 {strides = array<i32>} : memref<8x384xf32, #tpu.memory_space<vmem>>, vector<8x128xf32>,
    %c0_33 = arith.constant 0 : index
    %c0_34 = arith.constant 0 : index
    %73 = vector.load %arg7[%c0_33, %c0_34] : memref<8x384xf32, #tpu.memory_space<vmem>>, vector<8x384xf32>
    %c0_35 = arith.constant 0 : index
    %c0_36 = arith.constant 0 : index
    %74 = vector.load %arg4[%c0_35, %c0_36] : memref<384x128xf32, #tpu.memory_space<vmem>>, vector<384x128xf32>
    %cst_37 = arith.constant dense<0.000000e+00> : vector<8x128xf32>
    %75 = tpu.matmul %73, %74, %cst_37 {dimension_numbers = #tpu.dot_dimension_numbers<[1], [0], [0], [1], [0, 0, 1, 1], [], []>} : vector<8x384xf32>, vector<384x128xf32>, vector<8x128xf32> -> vector<8x128xf32>
    %c0_38 = arith.constant 0 : index
    %c0_39 = arith.constant 0 : index
    %76 = vector.load %arg5[%c0_38, %c0_39] : memref<1x128xf32, #tpu.memory_space<vmem>>, vector<1x128xf32>
    %77 = vector.broadcast %76 : vector<1x128xf32> to vector<8x128xf32>
    %78 = arith.addf %75, %77 : vector<8x128xf32>
    %c0_40 = arith.constant 0 : index
    %c0_41 = arith.constant 0 : index
    %79 = vector.load %arg6[%c0_40, %c0_41] : memref<8x128xf32, #tpu.memory_space<vmem>>, vector<8x128xf32>
    tpu.vector_store %arg6[%c0_40, %c0_41], %78 {strides = array<i32>} : memref<8x128xf32, #tpu.memory_space<vmem>>, vector<8x128xf32>,
    return
  }
}

</mosaic_0001>

<llo_original>
// kernel: tpu_custom_call.1
$region0: #{tpu_custom_call.1}
  #allocation0 [shape = 'u32[]', space=smem, size = 0x4, offset = 0x4, fixed_abs, tag = 'smem constant byte address 0x4 - core index']
  #allocation1 [shape = 'u32[144,128]{1,0:T(1,128)}', space=vmem, size = 0x12000, scoped, tag = 'internal scratch']
  #allocation2 [shape = 'f32[8,384]{1,0:T(8,128)}', space=vmem, size = 0x3000, scoped, tag = 'scratch operand']
  %s0 = inlined_call_operand.hbm [shape: f32[8,128], index: 0, kind: input, shape index: {}]
  %s1 = inlined_call_operand.hbm [shape: f32[4,128], index: 1, kind: input, shape index: {}]
  %s2 = inlined_call_operand.hbm [shape: f32[128,128], index: 2, kind: input, shape index: {}]
  %s3 = inlined_call_operand.hbm [shape: f32[256,128], index: 3, kind: input, shape index: {}]
  %s4 = inlined_call_operand.hbm [shape: f32[384,128], index: 4, kind: input, shape index: {}]
  %s5 = inlined_call_operand.vmem [shape: f32[1,128], index: 5, kind: input, shape index: {}]
  %s6 = inlined_call_operand.hbm [shape: f32[8,128], index: 6, kind: output, shape index: {}]
  %s7 = sld [smem:[#allocation0]]
  $region54: #{tpu_custom_call.1} parent=0
    _
  %s9 = ssub.s32 1, %s7
  %s10 = scalar_select 0, %s9, %s7
  $region1: #{tpu_custom_call.1} parent=0
    #allocation3 [shape = 'u8[4096]{0}', space=vmem, size = 0x1000, scoped, tag = 'input window, operand 0, single buffered']
    #allocation4 [shape = 's32[1]{0}', space=sflag, size = 0x4, scoped, tag = 'scoped memory for tpu_custom_call.1']
    #allocation5 [shape = 's32[1]{0}', space=sflag, size = 0x4, scoped, tag = 'scoped memory for tpu_custom_call.1']
    #allocation6 [shape = 'u8[2048]{0}', space=vmem, size = 0x800, scoped, tag = 'input window, operand 1, single buffered']
    #allocation7 [shape = 's32[1]{0}', space=sflag, size = 0x4, scoped, tag = 'scoped memory for tpu_custom_call.1']
    #allocation8 [shape = 'u8[65536]{0}', space=vmem, size = 0x10000, scoped, tag = 'input window, operand 2, single buffered']
    #allocation9 [shape = 'u8[131072]{0}', space=vmem, size = 0x20000, scoped, tag = 'input window, operand 3, single buffered']
    #allocation10 [shape = 's32[1]{0}', space=sflag, size = 0x4, scoped, tag = 'scoped memory for tpu_custom_call.1']
    #allocation11 [shape = 'u8[196608]{0}', space=vmem, size = 0x30000, scoped, tag = 'input window, operand 4, single buffered']
    #allocation12 [shape = 'u8[4096]{0}', space=vmem, size = 0x1000, scoped, tag = 'output window, operand 0, single buffered']
    %11 = vsyncpa [#allocation4], 0
    %12 = vsyncpa [#allocation7], 0
    %13 = vsyncpa [#allocation10], 0
    %14 = vsyncpa [#allocation5], 0
    // Predicated region
    $region2: #{tpu_custom_call.1} parent=1 // pred_check
      _
    $region3: #{tpu_custom_call.1} parent=1 // pred_check_branch
      %16 = sbr.rel (0) target = $region5
    $region4: #{tpu_custom_call.1} parent=1 // pred_region
      %s18 = ssub.s32 128, 128
      %19 = vsyncadd [#allocation4], %s18
      %s21 = sshll.u32 [#allocation3], 4
      %s22 = int_to_ptr.vmem [resolvable:$true] %s21
      %24 = dma.hbm_to_vmem [thread:$0]  %s0, 128, %s22, [#allocation4]
    $region5: #{tpu_custom_call.1} parent=1 // pred_fallthru
      _
    // Predicated region
    $region6: #{tpu_custom_call.1} parent=1 // pred_check
      _
    $region7: #{tpu_custom_call.1} parent=1 // pred_check_branch
      %26 = sbr.rel (0) target = $region9
    $region8: #{tpu_custom_call.1} parent=1 // pred_region
      %s28 = ssub.s32 64, 64
      %29 = vsyncadd [#allocation7], %s28
      %s31 = sshll.u32 [#allocation6], 4
      %s32 = int_to_ptr.vmem [resolvable:$true] %s31
      %34 = dma.hbm_to_vmem [thread:$0]  %s1, 64, %s32, [#allocation7]
    $region9: #{tpu_custom_call.1} parent=1 // pred_fallthru
      _
    // Predicated region
    $region10: #{tpu_custom_call.1} parent=1 // pred_check
      _
    $region11: #{tpu_custom_call.1} parent=1 // pred_check_branch
      %36 = sbr.rel (0) target = $region13
    $region12: #{tpu_custom_call.1} parent=1 // pred_region
      %s38 = ssub.s32 2048, 2048
      %39 = vsyncadd [#allocation7], %s38
      %s40 = sshll.u32 [#allocation8], 4
      %s41 = int_to_ptr.vmem [resolvable:$true] %s40
      %46 = dma.hbm_to_vmem [thread:$0]  %s2, 2048, %s41, [#allocation7], 128, 128, 8
    $region13: #{tpu_custom_call.1} parent=1 // pred_fallthru
      _
    // Predicated region
    $region14: #{tpu_custom_call.1} parent=1 // pred_check
      _
    $region15: #{tpu_custom_call.1} parent=1 // pred_check_branch
      %48 = sbr.rel (0) target = $region17
    $region16: #{tpu_custom_call.1} parent=1 // pred_region
      %s50 = ssub.s32 4096, 4096
      %51 = vsyncadd [#allocation10], %s50
      %s52 = sshll.u32 [#allocation9], 4
      %s53 = int_to_ptr.vmem [resolvable:$true] %s52
      %58 = dma.hbm_to_vmem [thread:$0]  %s3, 4096, %s53, [#allocation10], 128, 128, 8
    $region17: #{tpu_custom_call.1} parent=1 // pred_fallthru
      _
    // Predicated region
    $region18: #{tpu_custom_call.1} parent=1 // pred_check
      _
    $region19: #{tpu_custom_call.1} parent=1 // pred_check_branch
      %60 = sbr.rel (0) target = $region21
    $region20: #{tpu_custom_call.1} parent=1 // pred_region
      %s62 = ssub.s32 6144, 6144
      %63 = vsyncadd [#allocation10], %s62
      %s64 = sshll.u32 [#allocation11], 4
      %s65 = int_to_ptr.vmem [resolvable:$true] %s64
      %70 = dma.hbm_to_vmem [thread:$0]  %s4, 6144, %s65, [#allocation10], 128, 128, 8
    $region21: #{tpu_custom_call.1} parent=1 // pred_fallthru
      _
    // Predicated region
    $region22: #{tpu_custom_call.1} parent=1 // pred_check
      _
    $region23: #{tpu_custom_call.1} parent=1 // pred_check_branch
      %72 = sbr.rel (0) target = $region25
    $region24: #{tpu_custom_call.1} parent=1 // pred_region
      _
    $region25: #{tpu_custom_call.1} parent=1 // pred_fallthru
      _
    // Predicated region
    $region26: #{tpu_custom_call.1} parent=1 // pred_check
      _
    $region27: #{tpu_custom_call.1} parent=1 // pred_check_branch
      %74 = sbr.rel (0) target = $region29
    $region28: #{tpu_custom_call.1} parent=1 // pred_region
      %75 = dma.done [#allocation4], 128
    $region29: #{tpu_custom_call.1} parent=1 // pred_fallthru
      _
    // Predicated region
    $region30: #{tpu_custom_call.1} parent=1 // pred_check
      _
    $region31: #{tpu_custom_call.1} parent=1 // pred_check_branch
      %77 = sbr.rel (0) target = $region33
    $region32: #{tpu_custom_call.1} parent=1 // pred_region
      %78 = dma.done [#allocation7], 64
    $region33: #{tpu_custom_call.1} parent=1 // pred_fallthru
      _
    // Predicated region
    $region34: #{tpu_custom_call.1} parent=1 // pred_check
      _
    $region35: #{tpu_custom_call.1} parent=1 // pred_check_branch
      %80 = sbr.rel (0) target = $region37
    $region36: #{tpu_custom_call.1} parent=1 // pred_region
      %81 = dma.done [#allocation7], 2048
    $region37: #{tpu_custom_call.1} parent=1 // pred_fallthru
      _
    // Predicated region
    $region38: #{tpu_custom_call.1} parent=1 // pred_check
      _
    $region39: #{tpu_custom_call.1} parent=1 // pred_check_branch
      %83 = sbr.rel (0) target = $region41
    $region40: #{tpu_custom_call.1} parent=1 // pred_region
      %84 = dma.done [#allocation10], 4096
    $region41: #{tpu_custom_call.1} parent=1 // pred_fallthru
      _
    // Predicated region
    $region42: #{tpu_custom_call.1} parent=1 // pred_check
      _
    $region43: #{tpu_custom_call.1} parent=1 // pred_check_branch
      %86 = sbr.rel (0) target = $region45
    $region44: #{tpu_custom_call.1} parent=1 // pred_region
      %87 = dma.done [#allocation10], 6144
    $region45: #{tpu_custom_call.1} parent=1 // pred_fallthru
      _
    %v88 = vld [vmem:[#allocation3] sm:$0xff]
    %89 = vst [vmem:[#allocation2] sm:$0xff] %v88
    %v90 = vlaneseq
    %v91 = vshrl.u32 %v90, 7
    %vm92 = vcmp.lt.s32.totalorder %v91, 6
    %v93 = vsel %vm92, 1, 0
    %v94 = vcvt.s32.f32 %v93
    %v95 = vld [vmem:[#allocation2] sm:$0xff]
    %v96 = vld [vmem:[#allocation8] sm:$0xff]
    %v97 = vld [vmem:[#allocation8 + $0x8] sm:$0xff]
    %v98 = vld [vmem:[#allocation8 + $0x10] sm:$0xff]
    %v99 = vld [vmem:[#allocation8 + $0x18] sm:$0xff]
    %v100 = vld [vmem:[#allocation8 + $0x20] sm:$0xff]
    %v101 = vld [vmem:[#allocation8 + $0x28] sm:$0xff]
    %v102 = vld [vmem:[#allocation8 + $0x30] sm:$0xff]
    %v103 = vld [vmem:[#allocation8 + $0x38] sm:$0xff]
    %v104 = vld [vmem:[#allocation8 + $0x40] sm:$0xff]
    %v105 = vld [vmem:[#allocation8 + $0x48] sm:$0xff]
    %v106 = vld [vmem:[#allocation8 + $0x50] sm:$0xff]
    %v107 = vld [vmem:[#allocation8 + $0x58] sm:$0xff]
    %v108 = vld [vmem:[#allocation8 + $0x60] sm:$0xff]
    %v109 = vld [vmem:[#allocation8 + $0x68] sm:$0xff]
    %v110 = vld [vmem:[#allocation8 + $0x70] sm:$0xff]
    %v111 = vld [vmem:[#allocation8 + $0x78] sm:$0xff]
    %112 = vmatprep.subr.mxu0 0.0
    %113 = vmatpush1.msra.mxu0 %v96
    %114 = vmatprep.subr.mxu0 0.0
    %115 = vmatpush1.msra.mxu0 %v97
    %116 = vmatprep.subr.mxu0 0.0
    %117 = vmatpush1.msra.mxu0 %v98
    %118 = vmatprep.subr.mxu0 0.0
    %119 = vmatpush1.msra.mxu0 %v99
    %120 = vmatprep.subr.mxu0 0.0
    %121 = vmatpush1.msra.mxu0 %v100
    %122 = vmatprep.subr.mxu0 0.0
    %123 = vmatpush1.msra.mxu0 %v101
    %124 = vmatprep.subr.mxu0 0.0
    %125 = vmatpush1.msra.mxu0 %v102
    %126 = vmatprep.subr.mxu0 0.0
    %127 = vmatpush1.msra.mxu0 %v103
    %128 = vmatprep.subr.mxu0 0.0
    %129 = vmatpush1.msra.mxu0 %v104
    %130 = vmatprep.subr.mxu0 0.0
    %131 = vmatpush1.msra.mxu0 %v105
    %132 = vmatprep.subr.mxu0 0.0
    %133 = vmatpush1.msra.mxu0 %v106
    %134 = vmatprep.subr.mxu0 0.0
    %135 = vmatpush1.msra.mxu0 %v107
    %136 = vmatprep.subr.mxu0 0.0
    %137 = vmatpush1.msra.mxu0 %v108
    %138 = vmatprep.subr.mxu0 0.0
    %139 = vmatpush1.msra.mxu0 %v109
    %140 = vmatprep.subr.mxu0 0.0
    %141 = vmatpush1.msra.mxu0 %v110
    %142 = vmatprep.subr.mxu0 0.0
    %143 = vmatpush1.msra.mxu0 %v111
    %144 = vmatprep.subr.mxu0 0.0
    %145 = vmatpush1.msra.mxu0 0.0
    %146 = vmatprep.subr.mxu0 0.0
    %147 = vmatpush1.msra.mxu0 0.0
    %148 = vmatprep.subr.mxu0 0.0
    %149 = vmatpush1.msra.mxu0 0.0
    %150 = vmatprep.subr.mxu0 0.0
    %151 = vmatpush1.msra.mxu0 0.0
    %152 = vmatprep.subr.mxu0 0.0
    %153 = vmatpush1.msra.mxu0 0.0
    %154 = vmatprep.subr.mxu0 0.0
    %155 = vmatpush1.msra.mxu0 0.0
    %156 = vmatprep.subr.mxu0 0.0
    %157 = vmatpush1.msra.mxu0 0.0
    %158 = vmatprep.subr.mxu0 0.0
    %159 = vmatpush1.msra.mxu0 0.0
    %160 = vmatprep.subr.mxu0 0.0
    %161 = vmatpush1.msra.mxu0 0.0
    %162 = vmatprep.subr.mxu0 0.0
    %163 = vmatpush1.msra.mxu0 0.0
    %164 = vmatprep.subr.mxu0 0.0
    %165 = vmatpush1.msra.mxu0 0.0
    %166 = vmatprep.subr.mxu0 0.0
    %167 = vmatpush1.msra.mxu0 0.0
    %168 = vmatprep.subr.mxu0 0.0
    %169 = vmatpush1.msra.mxu0 0.0
    %170 = vmatprep.subr.mxu0 0.0
    %171 = vmatpush1.msra.mxu0 0.0
    %172 = vmatprep.subr.mxu0 0.0
    %173 = vmatpush1.msra.mxu0 0.0
    %174 = vmatprep.subr.mxu0 0.0
    %175 = vmatpush1.msra.mxu0 0.0
    %176 = vmatprep.mubr.f32.mxu0 0.0
    %177 = vmatmul.mubr.f32.gmra.mrb[0].mxu0 %v95
    %v178 = vpop.f32.mrb[0].mxu0
    %v179 = vadd.f32 0.0, %v178
    %v180 = vpop.f32.mrb[0].mxu0
    %181 = vdwg.mxu0
    %v182 = vmul.f32 %v179, %v94
    %v183 = vrot.slane %v182, 4
    %v184 = vadd.f32 %v182, %v183
    %v185 = vrot.slane %v184, 2
    %v186 = vadd.f32 %v184, %v185
    %v187 = vrot.slane %v186, 1
    %v188 = vadd.f32 %v186, %v187
    %v189 = vmul.f32 %v188, 0.16666667
    %v190 = vmul.f32 %v182, %v182
    %v191 = vrot.slane %v190, 4
    %v192 = vadd.f32 %v190, %v191
    %v193 = vrot.slane %v192, 2
    %v194 = vadd.f32 %v192, %v193
    %v195 = vrot.slane %v194, 1
    %v196 = vadd.f32 %v194, %v195
    %v197 = vmul.f32 %v196, 0.16666667
    %v198 = vmul.f32 %v189, %v189
    %v199 = vsub.f32 %v197, %v198
    %v200 = vmax.f32 %v199, 0.0
    %v201 = vld [vmem:[#allocation6] sm:$0x1]
    %v202 = vld [vmem:[#allocation6 + $0x1] sm:$0x1]
    %v203 = vadd.f32 %v200, 1e-05
    %v204 = vrsqrt.pop %v203
    %v205 = vmul.f32 %v201, %v204
    %v206 = vmul.f32 %v189, %v205
    %v207 = vsub.f32 %v202, %v206
    %v208 = vlaneseq
    %v209 = vshrl.u32 %v208, 7
    %v210 = vsub.s32 0, %v209
    %v211 = vrot.slane %v205, %v210
    %v212 = vmul.f32 %v179, %v211
    %v213 = vlaneseq
    %v214 = vshrl.u32 %v213, 7
    %v215 = vsub.s32 0, %v214
    %v216 = vrot.slane %v207, %v215
    %v217 = vadd.f32 %v212, %v216
    %v218 = vmax.f32 %v217, 0.0
    %219 = vst [vmem:[#allocation2 + $0x8] sm:$0xff] %v218
    %v220 = vld [vmem:[#allocation2] sm:$0xff]
    %v221 = vld [vmem:[#allocation2 + $0x8] sm:$0xff]
    %v222 = vld [vmem:[#allocation9] sm:$0xff]
    %v223 = vld [vmem:[#allocation9 + $0x8] sm:$0xff]
    %v224 = vld [vmem:[#allocation9 + $0x10] sm:$0xff]
    %v225 = vld [vmem:[#allocation9 + $0x18] sm:$0xff]
    %v226 = vld [vmem:[#allocation9 + $0x20] sm:$0xff]
    %v227 = vld [vmem:[#allocation9 + $0x28] sm:$0xff]
    %v228 = vld [vmem:[#allocation9 + $0x30] sm:$0xff]
    %v229 = vld [vmem:[#allocation9 + $0x38] sm:$0xff]
    %v230 = vld [vmem:[#allocation9 + $0x40] sm:$0xff]
    %v231 = vld [vmem:[#allocation9 + $0x48] sm:$0xff]
    %v232 = vld [vmem:[#allocation9 + $0x50] sm:$0xff]
    %v233 = vld [vmem:[#allocation9 + $0x58] sm:$0xff]
    %v234 = vld [vmem:[#allocation9 + $0x60] sm:$0xff]
    %v235 = vld [vmem:[#allocation9 + $0x68] sm:$0xff]
    %v236 = vld [vmem:[#allocation9 + $0x70] sm:$0xff]
    %v237 = vld [vmem:[#allocation9 + $0x78] sm:$0xff]
    %v238 = vld [vmem:[#allocation9 + $0x80] sm:$0xff]
    %v239 = vld [vmem:[#allocation9 + $0x88] sm:$0xff]
    %v240 = vld [vmem:[#allocation9 + $0x90] sm:$0xff]
    %v241 = vld [vmem:[#allocation9 + $0x98] sm:$0xff]
    %v242 = vld [vmem:[#allocation9 + $0xa0] sm:$0xff]
    %v243 = vld [vmem:[#allocation9 + $0xa8] sm:$0xff]
    %v244 = vld [vmem:[#allocation9 + $0xb0] sm:$0xff]
    %v245 = vld [vmem:[#allocation9 + $0xb8] sm:$0xff]
    %v246 = vld [vmem:[#allocation9 + $0xc0] sm:$0xff]
    %v247 = vld [vmem:[#allocation9 + $0xc8] sm:$0xff]
    %v248 = vld [vmem:[#allocation9 + $0xd0] sm:$0xff]
    %v249 = vld [vmem:[#allocation9 + $0xd8] sm:$0xff]
    %v250 = vld [vmem:[#allocation9 + $0xe0] sm:$0xff]
    %v251 = vld [vmem:[#allocation9 + $0xe8] sm:$0xff]
    %v252 = vld [vmem:[#allocation9 + $0xf0] sm:$0xff]
    %v253 = vld [vmem:[#allocation9 + $0xf8] sm:$0xff]
    %254 = vmatprep.subr.mxu0 0.0
    %255 = vmatpush1.msra.mxu0 %v222
    %256 = vmatprep.subr.mxu0 0.0
    %257 = vmatpush1.msra.mxu0 %v223
    %258 = vmatprep.subr.mxu0 0.0
    %259 = vmatpush1.msra.mxu0 %v224
    %260 = vmatprep.subr.mxu0 0.0
    %261 = vmatpush1.msra.mxu0 %v225
    %262 = vmatprep.subr.mxu0 0.0
    %263 = vmatpush1.msra.mxu0 %v226
    %264 = vmatprep.subr.mxu0 0.0
    %265 = vmatpush1.msra.mxu0 %v227
    %266 = vmatprep.subr.mxu0 0.0
    %267 = vmatpush1.msra.mxu0 %v228
    %268 = vmatprep.subr.mxu0 0.0
    %269 = vmatpush1.msra.mxu0 %v229
    %270 = vmatprep.subr.mxu0 0.0
    %271 = vmatpush1.msra.mxu0 %v230
    %272 = vmatprep.subr.mxu0 0.0
    %273 = vmatpush1.msra.mxu0 %v231
    %274 = vmatprep.subr.mxu0 0.0
    %275 = vmatpush1.msra.mxu0 %v232
    %276 = vmatprep.subr.mxu0 0.0
    %277 = vmatpush1.msra.mxu0 %v233
    %278 = vmatprep.subr.mxu0 0.0
    %279 = vmatpush1.msra.mxu0 %v234
    %280 = vmatprep.subr.mxu0 0.0
    %281 = vmatpush1.msra.mxu0 %v235
    %282 = vmatprep.subr.mxu0 0.0
    %283 = vmatpush1.msra.mxu0 %v236
    %284 = vmatprep.subr.mxu0 0.0
    %285 = vmatpush1.msra.mxu0 %v237
    %286 = vmatprep.subr.mxu0 0.0
    %287 = vmatpush1.msra.mxu0 %v238
    %288 = vmatprep.subr.mxu0 0.0
    %289 = vmatpush1.msra.mxu0 %v239
    %290 = vmatprep.subr.mxu0 0.0
    %291 = vmatpush1.msra.mxu0 %v240
    %292 = vmatprep.subr.mxu0 0.0
    %293 = vmatpush1.msra.mxu0 %v241
    %294 = vmatprep.subr.mxu0 0.0
    %295 = vmatpush1.msra.mxu0 %v242
    %296 = vmatprep.subr.mxu0 0.0
    %297 = vmatpush1.msra.mxu0 %v243
    %298 = vmatprep.subr.mxu0 0.0
    %299 = vmatpush1.msra.mxu0 %v244
    %300 = vmatprep.subr.mxu0 0.0
    %301 = vmatpush1.msra.mxu0 %v245
    %302 = vmatprep.subr.mxu0 0.0
    %303 = vmatpush1.msra.mxu0 %v246
    %304 = vmatprep.subr.mxu0 0.0
    %305 = vmatpush1.msra.mxu0 %v247
    %306 = vmatprep.subr.mxu0 0.0
    %307 = vmatpush1.msra.mxu0 %v248
    %308 = vmatprep.subr.mxu0 0.0
    %309 = vmatpush1.msra.mxu0 %v249
    %310 = vmatprep.subr.mxu0 0.0
    %311 = vmatpush1.msra.mxu0 %v250
    %312 = vmatprep.subr.mxu0 0.0
    %313 = vmatpush1.msra.mxu0 %v251
    %314 = vmatprep.subr.mxu0 0.0
    %315 = vmatpush1.msra.mxu0 %v252
    %316 = vmatprep.subr.mxu0 0.0
    %317 = vmatpush1.msra.mxu0 %v253
    %318 = vmatprep.mubr.f32.mxu0 %v221
    %319 = vmatmul.mubr.f32.gmra.mrb[0].mxu0 %v220
    %v320 = vpop.f32.mrb[0].mxu0
    %v321 = vadd.f32 0.0, %v320
    %v322 = vpop.f32.mrb[0].mxu0
    %323 = vdwg.mxu0
    %v324 = vmul.f32 %v321, %v94
    %v325 = vrot.slane %v324, 4
    %v326 = vadd.f32 %v324, %v325
    %v327 = vrot.slane %v326, 2
    %v328 = vadd.f32 %v326, %v327
    %v329 = vrot.slane %v328, 1
    %v330 = vadd.f32 %v328, %v329
    %v331 = vmul.f32 %v330, 0.16666667
    %v332 = vmul.f32 %v324, %v324
    %v333 = vrot.slane %v332, 4
    %v334 = vadd.f32 %v332, %v333
    %v335 = vrot.slane %v334, 2
    %v336 = vadd.f32 %v334, %v335
    %v337 = vrot.slane %v336, 1
    %v338 = vadd.f32 %v336, %v337
    %v339 = vmul.f32 %v338, 0.16666667
    %v340 = vmul.f32 %v331, %v331
    %v341 = vsub.f32 %v339, %v340
    %v342 = vmax.f32 %v341, 0.0
    %v343 = vld [vmem:[#allocation6 + $0x2] sm:$0x1]
    %v344 = vld [vmem:[#allocation6 + $0x3] sm:$0x1]
    %v345 = vadd.f32 %v342, 1e-05
    %v346 = vrsqrt.pop %v345
    %v347 = vmul.f32 %v343, %v346
    %v348 = vmul.f32 %v331, %v347
    %v349 = vsub.f32 %v344, %v348
    %v350 = vlaneseq
    %v351 = vshrl.u32 %v350, 7
    %v352 = vsub.s32 0, %v351
    %v353 = vrot.slane %v347, %v352
    %v354 = vmul.f32 %v321, %v353
    %v355 = vlaneseq
    %v356 = vshrl.u32 %v355, 7
    %v357 = vsub.s32 0, %v356
    %v358 = vrot.slane %v349, %v357
    %v359 = vadd.f32 %v354, %v358
    %v360 = vmax.f32 %v359, 0.0
    %361 = vst [vmem:[#allocation2 + $0x10] sm:$0xff] %v360
    %v362 = vld [vmem:[#allocation2] sm:$0xff]
    %v363 = vld [vmem:[#allocation2 + $0x8] sm:$0xff]
    %v364 = vld [vmem:[#allocation2 + $0x10] sm:$0xff]
    %v365 = vld [vmem:[#allocation11] sm:$0xff]
    %v366 = vld [vmem:[#allocation11 + $0x8] sm:$0xff]
    %v367 = vld [vmem:[#allocation11 + $0x10] sm:$0xff]
    %v368 = vld [vmem:[#allocation11 + $0x18] sm:$0xff]
    %v369 = vld [vmem:[#allocation11 + $0x20] sm:$0xff]
    %v370 = vld [vmem:[#allocation11 + $0x28] sm:$0xff]
    %v371 = vld [vmem:[#allocation11 + $0x30] sm:$0xff]
    %v372 = vld [vmem:[#allocation11 + $0x38] sm:$0xff]
    %v373 = vld [vmem:[#allocation11 + $0x40] sm:$0xff]
    %v374 = vld [vmem:[#allocation11 + $0x48] sm:$0xff]
    %v375 = vld [vmem:[#allocation11 + $0x50] sm:$0xff]
    %v376 = vld [vmem:[#allocation11 + $0x58] sm:$0xff]
    %v377 = vld [vmem:[#allocation11 + $0x60] sm:$0xff]
    %v378 = vld [vmem:[#allocation11 + $0x68] sm:$0xff]
    %v379 = vld [vmem:[#allocation11 + $0x70] sm:$0xff]
    %v380 = vld [vmem:[#allocation11 + $0x78] sm:$0xff]
    %v381 = vld [vmem:[#allocation11 + $0x80] sm:$0xff]
    %v382 = vld [vmem:[#allocation11 + $0x88] sm:$0xff]
    %v383 = vld [vmem:[#allocation11 + $0x90] sm:$0xff]
    %v384 = vld [vmem:[#allocation11 + $0x98] sm:$0xff]
    %v385 = vld [vmem:[#allocation11 + $0xa0] sm:$0xff]
    %v386 = vld [vmem:[#allocation11 + $0xa8] sm:$0xff]
    %v387 = vld [vmem:[#allocation11 + $0xb0] sm:$0xff]
    %v388 = vld [vmem:[#allocation11 + $0xb8] sm:$0xff]
    %v389 = vld [vmem:[#allocation11 + $0xc0] sm:$0xff]
    %v390 = vld [vmem:[#allocation11 + $0xc8] sm:$0xff]
    %v391 = vld [vmem:[#allocation11 + $0xd0] sm:$0xff]
    %v392 = vld [vmem:[#allocation11 + $0xd8] sm:$0xff]
    %v393 = vld [vmem:[#allocation11 + $0xe0] sm:$0xff]
    %v394 = vld [vmem:[#allocation11 + $0xe8] sm:$0xff]
    %v395 = vld [vmem:[#allocation11 + $0xf0] sm:$0xff]
    %v396 = vld [vmem:[#allocation11 + $0xf8] sm:$0xff]
    %v397 = vld [vmem:[#allocation11 + $0x100] sm:$0xff]
    %v398 = vld [vmem:[#allocation11 + $0x108] sm:$0xff]
    %v399 = vld [vmem:[#allocation11 + $0x110] sm:$0xff]
    %v400 = vld [vmem:[#allocation11 + $0x118] sm:$0xff]
    %v401 = vld [vmem:[#allocation11 + $0x120] sm:$0xff]
    %v402 = vld [vmem:[#allocation11 + $0x128] sm:$0xff]
    %v403 = vld [vmem:[#allocation11 + $0x130] sm:$0xff]
    %v404 = vld [vmem:[#allocation11 + $0x138] sm:$0xff]
    %v405 = vld [vmem:[#allocation11 + $0x140] sm:$0xff]
    %v406 = vld [vmem:[#allocation11 + $0x148] sm:$0xff]
    %v407 = vld [vmem:[#allocation11 + $0x150] sm:$0xff]
    %v408 = vld [vmem:[#allocation11 + $0x158] sm:$0xff]
    %v409 = vld [vmem:[#allocation11 + $0x160] sm:$0xff]
    %v410 = vld [vmem:[#allocation11 + $0x168] sm:$0xff]
    %v411 = vld [vmem:[#allocation11 + $0x170] sm:$0xff]
    %v412 = vld [vmem:[#allocation11 + $0x178] sm:$0xff]
    %v413 = vld [vmem:[%s5] sm:$0x1]
    %v415 = vlaneseq
    %v416 = vshrl.u32 %v415, 7
    %v417 = vsub.s32 0, %v416
    %v418 = vrot.slane %v413, %v417
    %420 = vmatprep.subr.mxu0 0.0
    %421 = vmatpush1.msra.mxu0 %v365
    %422 = vmatprep.subr.mxu0 0.0
    %423 = vmatpush1.msra.mxu0 %v366
    %424 = vmatprep.subr.mxu0 0.0
    %425 = vmatpush1.msra.mxu0 %v367
    %426 = vmatprep.subr.mxu0 0.0
    %427 = vmatpush1.msra.mxu0 %v368
    %428 = vmatprep.subr.mxu0 0.0
    %429 = vmatpush1.msra.mxu0 %v369
    %430 = vmatprep.subr.mxu0 0.0
    %431 = vmatpush1.msra.mxu0 %v370
    %432 = vmatprep.subr.mxu0 0.0
    %433 = vmatpush1.msra.mxu0 %v371
    %434 = vmatprep.subr.mxu0 0.0
    %435 = vmatpush1.msra.mxu0 %v372
    %436 = vmatprep.subr.mxu0 0.0
    %437 = vmatpush1.msra.mxu0 %v373
    %438 = vmatprep.subr.mxu0 0.0
    %439 = vmatpush1.msra.mxu0 %v374
    %440 = vmatprep.subr.mxu0 0.0
    %441 = vmatpush1.msra.mxu0 %v375
    %442 = vmatprep.subr.mxu0 0.0
    %443 = vmatpush1.msra.mxu0 %v376
    %444 = vmatprep.subr.mxu0 0.0
    %445 = vmatpush1.msra.mxu0 %v377
    %446 = vmatprep.subr.mxu0 0.0
    %447 = vmatpush1.msra.mxu0 %v378
    %448 = vmatprep.subr.mxu0 0.0
    %449 = vmatpush1.msra.mxu0 %v379
    %450 = vmatprep.subr.mxu0 0.0
    %451 = vmatpush1.msra.mxu0 %v380
    %452 = vmatprep.subr.mxu0 0.0
    %453 = vmatpush1.msra.mxu0 %v381
    %454 = vmatprep.subr.mxu0 0.0
    %455 = vmatpush1.msra.mxu0 %v382
    %456 = vmatprep.subr.mxu0 0.0
    %457 = vmatpush1.msra.mxu0 %v383
    %458 = vmatprep.subr.mxu0 0.0
    %459 = vmatpush1.msra.mxu0 %v384
    %460 = vmatprep.subr.mxu0 0.0
    %461 = vmatpush1.msra.mxu0 %v385
    %462 = vmatprep.subr.mxu0 0.0
    %463 = vmatpush1.msra.mxu0 %v386
    %464 = vmatprep.subr.mxu0 0.0
    %465 = vmatpush1.msra.mxu0 %v387
    %466 = vmatprep.subr.mxu0 0.0
    %467 = vmatpush1.msra.mxu0 %v388
    %468 = vmatprep.subr.mxu0 0.0
    %469 = vmatpush1.msra.mxu0 %v389
    %470 = vmatprep.subr.mxu0 0.0
    %471 = vmatpush1.msra.mxu0 %v390
    %472 = vmatprep.subr.mxu0 0.0
    %473 = vmatpush1.msra.mxu0 %v391
    %474 = vmatprep.subr.mxu0 0.0
    %475 = vmatpush1.msra.mxu0 %v392
    %476 = vmatprep.subr.mxu0 0.0
    %477 = vmatpush1.msra.mxu0 %v393
    %478 = vmatprep.subr.mxu0 0.0
    %479 = vmatpush1.msra.mxu0 %v394
    %480 = vmatprep.subr.mxu0 0.0
    %481 = vmatpush1.msra.mxu0 %v395
    %482 = vmatprep.subr.mxu0 0.0
    %483 = vmatpush1.msra.mxu0 %v396
    %484 = vmatprep.mubr.f32.mxu0 %v363
    %485 = vmatmul.mubr.f32.gmra.mrb[0].mxu0 %v362
    %v486 = vpop.f32.mrb[0].mxu0
    %v487 = vadd.f32 %v418, %v486
    %v488 = vpop.f32.mrb[0].mxu0
    %489 = vdwg.mxu0
    %490 = vmatprep.subr.mxu0 0.0
    %491 = vmatpush1.msra.mxu0 %v397
    %492 = vmatprep.subr.mxu0 0.0
    %493 = vmatpush1.msra.mxu0 %v398
    %494 = vmatprep.subr.mxu0 0.0
    %495 = vmatpush1.msra.mxu0 %v399
    %496 = vmatprep.subr.mxu0 0.0
    %497 = vmatpush1.msra.mxu0 %v400
    %498 = vmatprep.subr.mxu0 0.0
    %499 = vmatpush1.msra.mxu0 %v401
    %500 = vmatprep.subr.mxu0 0.0
    %501 = vmatpush1.msra.mxu0 %v402
    %502 = vmatprep.subr.mxu0 0.0
    %503 = vmatpush1.msra.mxu0 %v403
    %504 = vmatprep.subr.mxu0 0.0
    %505 = vmatpush1.msra.mxu0 %v404
    %506 = vmatprep.subr.mxu0 0.0
    %507 = vmatpush1.msra.mxu0 %v405
    %508 = vmatprep.subr.mxu0 0.0
    %509 = vmatpush1.msra.mxu0 %v406
    %510 = vmatprep.subr.mxu0 0.0
    %511 = vmatpush1.msra.mxu0 %v407
    %512 = vmatprep.subr.mxu0 0.0
    %513 = vmatpush1.msra.mxu0 %v408
    %514 = vmatprep.subr.mxu0 0.0
    %515 = vmatpush1.msra.mxu0 %v409
    %516 = vmatprep.subr.mxu0 0.0
    %517 = vmatpush1.msra.mxu0 %v410
    %518 = vmatprep.subr.mxu0 0.0
    %519 = vmatpush1.msra.mxu0 %v411
    %520 = vmatprep.subr.mxu0 0.0
    %521 = vmatpush1.msra.mxu0 %v412
    %522 = vmatprep.subr.mxu0 0.0
    %523 = vmatpush1.msra.mxu0 0.0
    %524 = vmatprep.subr.mxu0 0.0
    %525 = vmatpush1.msra.mxu0 0.0
    %526 = vmatprep.subr.mxu0 0.0
    %527 = vmatpush1.msra.mxu0 0.0
    %528 = vmatprep.subr.mxu0 0.0
    %529 = vmatpush1.msra.mxu0 0.0
    %530 = vmatprep.subr.mxu0 0.0
    %531 = vmatpush1.msra.mxu0 0.0
    %532 = vmatprep.subr.mxu0 0.0
    %533 = vmatpush1.msra.mxu0 0.0
    %534 = vmatprep.subr.mxu0 0.0
    %535 = vmatpush1.msra.mxu0 0.0
    %536 = vmatprep.subr.mxu0 0.0
    %537 = vmatpush1.msra.mxu0 0.0
    %538 = vmatprep.subr.mxu0 0.0
    %539 = vmatpush1.msra.mxu0 0.0
    %540 = vmatprep.subr.mxu0 0.0
    %541 = vmatpush1.msra.mxu0 0.0
    %542 = vmatprep.subr.mxu0 0.0
    %543 = vmatpush1.msra.mxu0 0.0
    %544 = vmatprep.subr.mxu0 0.0
    %545 = vmatpush1.msra.mxu0 0.0
    %546 = vmatprep.subr.mxu0 0.0
    %547 = vmatpush1.msra.mxu0 0.0
    %548 = vmatprep.subr.mxu0 0.0
    %549 = vmatpush1.msra.mxu0 0.0
    %550 = vmatprep.subr.mxu0 0.0
    %551 = vmatpush1.msra.mxu0 0.0
    %552 = vmatprep.subr.mxu0 0.0
    %553 = vmatpush1.msra.mxu0 0.0
    %554 = vmatprep.mubr.f32.mxu0 0.0
    %555 = vmatmul.mubr.f32.gmra.mrb[0].mxu0 %v364
    %v556 = vpop.f32.mrb[0].mxu0
    %v557 = vadd.f32 %v487, %v556
    %v558 = vpop.f32.mrb[0].mxu0
    %559 = vdwg.mxu0
    %560 = vst [vmem:[#allocation12] sm:$0xff] %v557
    // Predicated region
    $region46: #{tpu_custom_call.1} parent=1 // pred_check
      _
    $region47: #{tpu_custom_call.1} parent=1 // pred_check_branch
      %562 = sbr.rel (0) target = $region49
    $region48: #{tpu_custom_call.1} parent=1 // pred_region
      %s564 = ssub.s32 128, 128
      %565 = vsyncadd [#allocation5], %s564
      %s567 = sshll.u32 [#allocation12], 4
      %s568 = int_to_ptr.vmem [resolvable:$true] %s567
      %570 = dma.vmem_to_hbm [thread:$0]  %s568, 128, %s6, [#allocation5]
    $region49: #{tpu_custom_call.1} parent=1 // pred_fallthru
      _
    // Predicated region
    $region50: #{tpu_custom_call.1} parent=1 // pred_check
      _
    $region51: #{tpu_custom_call.1} parent=1 // pred_check_branch
      %572 = sbr.rel (0) target = $region53
    $region52: #{tpu_custom_call.1} parent=1 // pred_region
      %573 = dma.done [#allocation5], 128
    $region53: #{tpu_custom_call.1} parent=1 // pred_fallthru
      _
    %574 = vsyncpa [#allocation4], 1
    %575 = vsyncpa [#allocation7], 1
    %576 = vsyncpa [#allocation10], 1
    %577 = vsyncpa [#allocation5], 1

</llo_original>
